<compile_context>
chip_gen: v7x
topology: tpu7x:2x2x1
jax: 0.10.0
libtpu: 0.0.40
codegen_flags: <defaults>
</compile_context>

<pallas_src>
import functools

import jax
import jax.numpy as jnp
from jax import lax
from jax.experimental import pallas as pl
from jax.experimental.pallas import tpu as pltpu

_LANES = 128
_SUBLANES = 8
_CHUNK = _SUBLANES * _LANES          # 1024 elements = one (8,128) f32 vreg tile
_MAX_BLK_TILES = 512                 # 512 * 4 KiB = 2 MiB per streamed f32 block
_VMEM_LIMIT = 32 * 1024 * 1024       # explicit scoped-VMEM limit (safe on v5e/v6e/v7x)

# NOTE: pipeline depth left at the default double-buffering; sweep
# pl.Buffered(3) on the streaming input if DMA issue latency shows up.


def _round_up(x, m):
    return ((x + m - 1) // m) * m


# ----------------------------------------------------------------------------
# Kernel 1: global min/max reduction (track_type in {'activation', 'weight'})
# ----------------------------------------------------------------------------
def _global_minmax_kernel(x_ref, min_ref, max_ref, *, n_valid, blk_tiles,
                          blocks_per_split, needs_mask):
    k = pl.program_id(1)   # reduction axis (last, 'arbitrary')

    @pl.when(k == 0)
    def _init():
        min_ref[...] = jnp.full(min_ref.shape, jnp.inf, dtype=min_ref.dtype)
        max_ref[...] = jnp.full(max_ref.shape, -jnp.inf, dtype=max_ref.dtype)

    # Cast per block inside the kernel (free VPU work hidden under the DMA).
    x = x_ref[...].astype(jnp.float32)          # (blk_tiles, 8, 128)

    if needs_mask:
        # Mask pad / out-of-bounds elements by their logical flat index.
        gb = pl.program_id(0) * blocks_per_split + k    # logical block index
        i0 = lax.broadcasted_iota(jnp.int32, x.shape, 0)
        i1 = lax.broadcasted_iota(jnp.int32, x.shape, 1)
        i2 = lax.broadcasted_iota(jnp.int32, x.shape, 2)
        flat = (gb * blk_tiles + i0) * _CHUNK + i1 * _LANES + i2
        valid = flat < n_valid
        x_min = jnp.where(valid, x, jnp.inf)
        x_max = jnp.where(valid, x, -jnp.inf)
    else:
        x_min = x
        x_max = x

    # VPU-only (vreg-wise) accumulation into the resident (1,8,128) output
    # block; no per-step cross-lane XLU reduction.
    min_ref[...] = jnp.minimum(min_ref[...], jnp.min(x_min, axis=0, keepdims=True))
    max_ref[...] = jnp.maximum(max_ref[...], jnp.max(x_max, axis=0, keepdims=True))


def global_minmax(x):
    n = int(x.size)
    if n == 0:
        raise ValueError("global_minmax on an empty tensor")

    flat = x.reshape(-1)                          # free reshape, native dtype
    padded = _round_up(n, _CHUNK)
    if padded != n:
        # Tiny (<1024 elem) tail pad; padded values are masked inside the kernel.
        flat = jnp.pad(flat, (0, padded - n))
    x3 = flat.reshape(-1, _SUBLANES, _LANES)      # (S, 8, 128)
    s_tiles = x3.shape[0]

    blk_tiles = min(_MAX_BLK_TILES, s_tiles)      # <= 2 MiB (f32) per block
    blocks_total = pl.cdiv(s_tiles, blk_tiles)
    splits = 2 if blocks_total >= 2 else 1        # shard streaming across v7x's 2 TCs
    bps = pl.cdiv(blocks_total, splits)
    needs_mask = (splits * bps * blk_tiles * _CHUNK) != n
    last_block = blocks_total - 1

    kernel = functools.partial(
        _global_minmax_kernel, n_valid=n, blk_tiles=blk_tiles,
        blocks_per_split=bps, needs_mask=needs_mask)

    def in_map(c, k):
        # Clamp logical block index; any duplicated data is fully masked.
        return (jnp.minimum(c * bps + k, last_block), 0, 0)

    mn, mx = pl.pallas_call(
        kernel,
        out_shape=(jax.ShapeDtypeStruct((splits, _SUBLANES, _LANES), jnp.float32),
                   jax.ShapeDtypeStruct((splits, _SUBLANES, _LANES), jnp.float32)),
        grid=(splits, bps),
        in_specs=[pl.BlockSpec((blk_tiles, _SUBLANES, _LANES), in_map)],
        out_specs=(pl.BlockSpec((1, _SUBLANES, _LANES), lambda c, k: (c, 0, 0)),
                   pl.BlockSpec((1, _SUBLANES, _LANES), lambda c, k: (c, 0, 0))),
        compiler_params=pltpu.CompilerParams(
            dimension_semantics=("parallel", "arbitrary"),
            vmem_limit_bytes=_VMEM_LIMIT),
    )(x3)

    # Tiny (<= 8 KiB) final cross-lane reduce + split combine in XLA.
    return jnp.min(mn).astype(x.dtype), jnp.max(mx).astype(x.dtype)


# ----------------------------------------------------------------------------
# Kernel 2: per-channel min/max (track_type == 'weight_per_channel')
# ----------------------------------------------------------------------------
def _per_channel_minmax_kernel(x_ref, min_ref, max_ref, *, k_valid, tile_k,
                               needs_mask):
    k = pl.program_id(1)   # K reduction axis (last, 'arbitrary')

    @pl.when(k == 0)
    def _init():
        min_ref[...] = jnp.full(min_ref.shape, jnp.inf, dtype=min_ref.dtype)
        max_ref[...] = jnp.full(max_ref.shape, -jnp.inf, dtype=max_ref.dtype)

    x = x_ref[...].astype(jnp.float32)            # (tile_r, tile_k)

    if needs_mask:
        col = k * tile_k + lax.broadcasted_iota(jnp.int32, x.shape, 1)
        valid = col < k_valid
        x_min = jnp.where(valid, x, jnp.inf)
        x_max = jnp.where(valid, x, -jnp.inf)
    else:
        x_min = x
        x_max = x

    min_ref[...] = jnp.minimum(min_ref[...],
                               jnp.min(x_min, axis=-1, keepdims=True))
    max_ref[...] = jnp.maximum(max_ref[...],
                               jnp.max(x_max, axis=-1, keepdims=True))


def per_channel_minmax(x, per_dim):
    shape = x.shape
    rows = 1
    for i in range(per_dim + 1):
        rows *= shape[i]
    x2 = x.reshape(rows, -1)                      # free reshape, native dtype
    R, K = x2.shape

    # Full-dim blocks when small (always legal), otherwise aligned tiles.
    tile_r = R if R <= 256 else 256               # 256 is a multiple of 32 (any dtype)
    tile_k = K if K <= 1024 else 1024             # multiple of 128 lanes
    gr = pl.cdiv(R, tile_r)
    gk = pl.cdiv(K, tile_k)
    needs_mask = (gk * tile_k) != K               # only column tail needs masking;
                                                  # OOB rows' outputs are discarded.

    kernel = functools.partial(_per_channel_minmax_kernel,
                               k_valid=K, tile_k=tile_k, needs_mask=needs_mask)

    mn, mx = pl.pallas_call(
        kernel,
        out_shape=(jax.ShapeDtypeStruct((R, 1), jnp.float32),
                   jax.ShapeDtypeStruct((R, 1), jnp.float32)),
        grid=(gr, gk),
        in_specs=[pl.BlockSpec((tile_r, tile_k), lambda r, k: (r, k))],
        out_specs=(pl.BlockSpec((tile_r, 1), lambda r, k: (r, 0)),
                   pl.BlockSpec((tile_r, 1), lambda r, k: (r, 0))),
        compiler_params=pltpu.CompilerParams(
            dimension_semantics=("parallel", "arbitrary"),
            vmem_limit_bytes=_VMEM_LIMIT),
    )(x2)

    # Mirrors torch .reshape([inputs.shape[per_dim], 1, 1, 1])
    mn = mn[:, 0].reshape(shape[per_dim], 1, 1, 1).astype(x.dtype)
    mx = mx[:, 0].reshape(shape[per_dim], 1, 1, 1).astype(x.dtype)
    return mn, mx


# ----------------------------------------------------------------------------
# Module wrapper reproducing RangeTracker.forward semantics
# ----------------------------------------------------------------------------
class RangeTrackerPallas:
    # NOTE: Python-side mutable state (min_val/max_val/step) is fine when run
    # eagerly; do not wrap __call__ in jax.jit.
    def __init__(self, per_dim, track_type):
        self.per_dim = per_dim
        self.track_type = track_type
        self.min_val = None
        self.max_val = None
        self.step = jnp.array(0, jnp.int32)

    def update_range(self, min_val, max_val):
        # TODO(synk): base class raises NotImplementedError (subclasses define
        # the EMA/global policy); here we simply store the observed range.
        self.min_val = min_val
        self.max_val = max_val
        self.step = self.step + 1

    def __call__(self, inputs):
        if self.track_type in ("activation", "weight"):
            min_val, max_val = global_minmax(inputs)
        elif self.track_type == "weight_per_channel":
            min_val, max_val = per_channel_minmax(inputs, self.per_dim)
        else:
            return None
        self.update_range(min_val, max_val)
        return min_val, max_val


if __name__ == "__main__":
    key = jax.random.PRNGKey(0)
    k1, k2, k3, k4, k5 = jax.random.split(key, 5)

    # Small shapes consistent with the module: NCHW activation + conv weight.
    x = jax.random.normal(k1, (2, 4, 16, 16), dtype=jnp.float32)
    w = jax.random.normal(k2, (4, 4, 3, 3), dtype=jnp.float32)

    # Global (activation) tracking.
    act_tracker = RangeTrackerPallas(per_dim=None, track_type="activation")
    mn_a, mx_a = act_tracker(x)
    jax.block_until_ready((mn_a, mx_a))
    assert jnp.allclose(mn_a, jnp.min(x)), (mn_a, jnp.min(x))
    assert jnp.allclose(mx_a, jnp.max(x)), (mx_a, jnp.max(x))

    # Per-output-channel weight tracking (per_dim=0).
    w_tracker = RangeTrackerPallas(per_dim=0, track_type="weight_per_channel")
    mn_w, mx_w = w_tracker(w)
    jax.block_until_ready((mn_w, mx_w))
    ref_mn = jnp.min(w.reshape(w.shape[0], -1), axis=-1).reshape(-1, 1, 1, 1)
    ref_mx = jnp.max(w.reshape(w.shape[0], -1), axis=-1).reshape(-1, 1, 1, 1)
    assert mn_w.shape == (4, 1, 1, 1) and mx_w.shape == (4, 1, 1, 1)
    assert jnp.allclose(mn_w, ref_mn)
    assert jnp.allclose(mx_w, ref_mx)

    # Extra coverage: non-1024-aligned size (pad + in-kernel masking path).
    x_odd = jax.random.normal(k3, (3, 5, 7, 11), dtype=jnp.float32)
    mn_o, mx_o = global_minmax(x_odd)
    assert jnp.allclose(mn_o, jnp.min(x_odd))
    assert jnp.allclose(mx_o, jnp.max(x_odd))

    # Extra coverage: multi-block / two-split streaming path.
    x_big = jax.random.normal(k4, (8, 64, 32, 36), dtype=jnp.float32)
    mn_b, mx_b = global_minmax(x_big)
    assert jnp.allclose(mn_b, jnp.min(x_big))
    assert jnp.allclose(mx_b, jnp.max(x_big))

    # Extra coverage: per-channel with a tiled K reduction axis (K > 1024).
    w_big = jax.random.normal(k5, (8, 256, 3, 3), dtype=jnp.float32)
    mn_wb, mx_wb = per_channel_minmax(w_big, per_dim=0)
    ref_mn_b = jnp.min(w_big.reshape(8, -1), axis=-1).reshape(-1, 1, 1, 1)
    ref_mx_b = jnp.max(w_big.reshape(8, -1), axis=-1).reshape(-1, 1, 1, 1)
    assert jnp.allclose(mn_wb, ref_mn_b)
    assert jnp.allclose(mx_wb, ref_mx_b)

    jax.block_until_ready((mn_o, mx_o, mn_b, mx_b, mn_wb, mx_wb))
    print("KERNEL_OK")
</pallas_src>

<mosaic_0001>
module attributes {stable_mosaic.version = 11 : i64} {
  func.func @_global_minmax_kernel(%arg0: i32, %arg1: i32, %arg2: memref<2x8x128xf32, #tpu.memory_space<vmem>>, %arg3: memref<1x8x128xf32, #tpu.memory_space<vmem>>, %arg4: memref<1x8x128xf32, #tpu.memory_space<vmem>>) attributes {dimension_semantics = [#tpu.dimension_semantics<parallel>, #tpu.dimension_semantics<arbitrary>], iteration_bounds = array<i64: 1, 1>, scalar_prefetch = 0 : i64, scratch_operands = 0 : i64, tpu.core_type = #tpu.core_type<tc>, window_params = [{transform_indices = @transform_0, window_bounds = array<i64: 2, 8, 128>}, {transform_indices = @transform_1, window_bounds = array<i64: 1, 8, 128>}, {transform_indices = @transform_2, window_bounds = array<i64: 1, 8, 128>}]} {
    %c0_i32 = arith.constant 0 : i32
    %0 = arith.cmpi eq, %arg1, %c0_i32 : i32
    %1 = arith.extui %0 : i1 to i32
    %c0_i32_0 = arith.constant 0 : i32
    %2 = arith.cmpi ne, %1, %c0_i32_0 : i32
    scf.if %2 {
      %cst_16 = arith.constant 0x7F800000 : f32
      %14 = vector.broadcast %cst_16 : f32 to vector<1x8x128xf32>
      %c0_17 = arith.constant 0 : index
      %c0_18 = arith.constant 0 : index
      %c0_19 = arith.constant 0 : index
      %15 = vector.load %arg3[%c0_17, %c0_18, %c0_19] : memref<1x8x128xf32, #tpu.memory_space<vmem>>, vector<1x8x128xf32>
      tpu.vector_store %arg3[%c0_17, %c0_18, %c0_19], %14 {strides = array<i32>} : memref<1x8x128xf32, #tpu.memory_space<vmem>>, vector<1x8x128xf32>,
      %cst_20 = arith.constant 0xFF800000 : f32
      %16 = vector.broadcast %cst_20 : f32 to vector<1x8x128xf32>
      %c0_21 = arith.constant 0 : index
      %c0_22 = arith.constant 0 : index
      %c0_23 = arith.constant 0 : index
      %17 = vector.load %arg4[%c0_21, %c0_22, %c0_23] : memref<1x8x128xf32, #tpu.memory_space<vmem>>, vector<1x8x128xf32>
      tpu.vector_store %arg4[%c0_21, %c0_22, %c0_23], %16 {strides = array<i32>} : memref<1x8x128xf32, #tpu.memory_space<vmem>>, vector<1x8x128xf32>,
    } else {
    }
    %c0 = arith.constant 0 : index
    %c0_1 = arith.constant 0 : index
    %c0_2 = arith.constant 0 : index
    %3 = vector.load %arg2[%c0, %c0_1, %c0_2] : memref<2x8x128xf32, #tpu.memory_space<vmem>>, vector<2x8x128xf32>
    %c0_3 = arith.constant 0 : index
    %c0_4 = arith.constant 0 : index
    %c0_5 = arith.constant 0 : index
    %4 = vector.load %arg3[%c0_3, %c0_4, %c0_5] : memref<1x8x128xf32, #tpu.memory_space<vmem>>, vector<1x8x128xf32>
    %cst = arith.constant dense<0x7F800000> : vector<8x128xf32>
    %5 = vector.multi_reduction <minimumf>, %3, %cst [0] : vector<2x8x128xf32> to vector<8x128xf32>
    %6 = vector.shape_cast %5 : vector<8x128xf32> to vector<1x8x128xf32>
    %7 = arith.minimumf %4, %6 : vector<1x8x128xf32>
    %c0_6 = arith.constant 0 : index
    %c0_7 = arith.constant 0 : index
    %c0_8 = arith.constant 0 : index
    %8 = vector.load %arg3[%c0_6, %c0_7, %c0_8] : memref<1x8x128xf32, #tpu.memory_space<vmem>>, vector<1x8x128xf32>
    tpu.vector_store %arg3[%c0_6, %c0_7, %c0_8], %7 {strides = array<i32>} : memref<1x8x128xf32, #tpu.memory_space<vmem>>, vector<1x8x128xf32>,
    %c0_9 = arith.constant 0 : index
    %c0_10 = arith.constant 0 : index
    %c0_11 = arith.constant 0 : index
    %9 = vector.load %arg4[%c0_9, %c0_10, %c0_11] : memref<1x8x128xf32, #tpu.memory_space<vmem>>, vector<1x8x128xf32>
    %cst_12 = arith.constant dense<0xFF800000> : vector<8x128xf32>
    %10 = vector.multi_reduction <maximumf>, %3, %cst_12 [0] : vector<2x8x128xf32> to vector<8x128xf32>
    %11 = vector.shape_cast %10 : vector<8x128xf32> to vector<1x8x128xf32>
    %12 = arith.maximumf %9, %11 : vector<1x8x128xf32>
    %c0_13 = arith.constant 0 : index
    %c0_14 = arith.constant 0 : index
    %c0_15 = arith.constant 0 : index
    %13 = vector.load %arg4[%c0_13, %c0_14, %c0_15] : memref<1x8x128xf32, #tpu.memory_space<vmem>>, vector<1x8x128xf32>
    tpu.vector_store %arg4[%c0_13, %c0_14, %c0_15], %12 {strides = array<i32>} : memref<1x8x128xf32, #tpu.memory_space<vmem>>, vector<1x8x128xf32>,
    return
  }
  func.func @transform_0(%arg0: i32, %arg1: i32) -> (i32, i32, i32) {
    %c1_i32 = arith.constant 1 : i32
    %0 = arith.muli %arg0, %c1_i32 : i32
    %1 = arith.addi %0, %arg1 : i32
    %c0_i32 = arith.constant 0 : i32
    %2 = arith.minsi %1, %c0_i32 : i32
    %c0_i32_0 = arith.constant 0 : i32
    %c0_i32_1 = arith.constant 0 : i32
    %c0_i32_2 = arith.constant 0 : i32
    return %2, %c0_i32_0, %c0_i32_1 : i32, i32, i32
  }
  func.func @transform_1(%arg0: i32, %arg1: i32) -> (i32, i32, i32) {
    %c0_i32 = arith.constant 0 : i32
    %c0_i32_0 = arith.constant 0 : i32
    %c0_i32_1 = arith.constant 0 : i32
    return %arg0, %c0_i32, %c0_i32_0 : i32, i32, i32
  }
  func.func @transform_2(%arg0: i32, %arg1: i32) -> (i32, i32, i32) {
    %c0_i32 = arith.constant 0 : i32
    %c0_i32_0 = arith.constant 0 : i32
    %c0_i32_1 = arith.constant 0 : i32
    return %arg0, %c0_i32, %c0_i32_0 : i32, i32, i32
  }
}

</mosaic_0001>

<llo_original>
// kernel: tpu_custom_call.1
$region0: #{tpu_custom_call.1}
  #allocation0 [shape = 'u32[]', space=smem, size = 0x4, offset = 0x4, fixed_abs, tag = 'smem constant byte address 0x4 - core index']
  #allocation1 [shape = 'u32[144,128]{1,0:T(1,128)}', space=vmem, size = 0x12000, scoped, tag = 'internal scratch']
  %s0 = inlined_call_operand.hbm [shape: f32[2,8,128], index: 0, kind: input, shape index: {}]
  %s1 = inlined_call_operand.hbm [shape: f32[1,8,128], index: 1, kind: output, shape index: {0}]
  %s2 = inlined_call_operand.hbm [shape: f32[1,8,128], index: 2, kind: output, shape index: {1}]
  %3 = xla_tuple %s1, %s2
  %s4 = sld [smem:[#allocation0]]
  $region30: #{tpu_custom_call.1} parent=0
    _
  %s6 = ssub.s32 1, %s4
  %s7 = scalar_select 0, %s6, %s4
  $region1: #{tpu_custom_call.1} parent=0
    #allocation2 [shape = 'u8[8192]{0}', space=vmem, size = 0x2000, scoped, tag = 'input window, operand 0, single buffered']
    #allocation3 [shape = 's32[1]{0}', space=sflag, size = 0x4, scoped, tag = 'scoped memory for tpu_custom_call.1']
    #allocation4 [shape = 's32[1]{0}', space=sflag, size = 0x4, scoped, tag = 'scoped memory for tpu_custom_call.1']
    #allocation5 [shape = 'u8[4096]{0}', space=vmem, size = 0x1000, scoped, tag = 'output window, operand 0, single buffered']
    #allocation6 [shape = 'u8[4096]{0}', space=vmem, size = 0x1000, scoped, tag = 'output window, operand 1, single buffered']
    #allocation7 [shape = 's32[1]{0}', space=sflag, size = 0x4, scoped, tag = 'scoped memory for tpu_custom_call.1']
    %8 = vsyncpa [#allocation3], 0
    %9 = vsyncpa [#allocation4], 0
    %10 = vsyncpa [#allocation7], 0
    // Predicated region
    $region2: #{tpu_custom_call.1} parent=1 // pred_check
      _
    $region3: #{tpu_custom_call.1} parent=1 // pred_check_branch
      %12 = sbr.rel (0) target = $region5
    $region4: #{tpu_custom_call.1} parent=1 // pred_region
      %s13 = sadd.s32 0, 0
      %p14 = scmp.lt.s32.totalorder %s13, 0
      %s15 = scalar_select %p14, %s13, 0
      %s16 = smul.u32 2, %s15
      %s18 = ssub.s32 256, 256
      %19 = vsyncadd [#allocation3], %s18
      %s20 = smul.addr %s16, 128
      %s21 = scalar_lea.hbm %s0, %s20
      %s22 = sshll.u32 [#allocation2], 4
      %s23 = int_to_ptr.vmem [resolvable:$true] %s22
      %28 = dma.hbm_to_vmem [thread:$0]  %s21, 256, %s23, [#allocation3], 128, 128, 8
    $region5: #{tpu_custom_call.1} parent=1 // pred_fallthru
      _
    // Predicated region
    $region6: #{tpu_custom_call.1} parent=1 // pred_check
      _
    $region7: #{tpu_custom_call.1} parent=1 // pred_check_branch
      %30 = sbr.rel (0) target = $region9
    $region8: #{tpu_custom_call.1} parent=1 // pred_region
      %31 = dma.done [#allocation3], 256
    $region9: #{tpu_custom_call.1} parent=1 // pred_fallthru
      _
    %s32 = sadd.s32 0, 0
    %p33 = scmp.lt.s32.totalorder %s32, 0
    %s34 = scalar_select %p33, %s32, 0
    %s35 = smul.u32 2, %s34
    %p36 = scmp.eq.s32.totalorder 0, 0
    // Predicated region
    $region10: #{tpu_custom_call.1} parent=1 // pred_check
      %p37 = pneg %p36
    $region11: #{tpu_custom_call.1} parent=1 // pred_check_branch
      %39 = sbr.rel (%p37) target = $region13
    $region12: #{tpu_custom_call.1} parent=1 // pred_region
      %40 = vst [vmem:[#allocation5] sm:$0xff] inf
      %41 = vst [vmem:[#allocation6] sm:$0xff] -inf
    $region13: #{tpu_custom_call.1} parent=1 // pred_fallthru
      _
    %v42 = vld [vmem:[#allocation2] sm:$0xff]
    %v43 = vld [vmem:[#allocation2 + $0x8] sm:$0xff]
    %v44 = vld [vmem:[#allocation5] sm:$0xff]
    %v45 = vmin.f32 %v42, %v43
    %v46 = vmin.f32 %v44, %v45
    %47 = vst [vmem:[#allocation5] sm:$0xff] %v46
    %v48 = vld [vmem:[#allocation6] sm:$0xff]
    %v49 = vmax.f32 %v42, %v43
    %v50 = vmax.f32 %v48, %v49
    %51 = vst [vmem:[#allocation6] sm:$0xff] %v50
    // Predicated region
    $region14: #{tpu_custom_call.1} parent=1 // pred_check
      _
    $region15: #{tpu_custom_call.1} parent=1 // pred_check_branch
      %53 = sbr.rel (0) target = $region17
    $region16: #{tpu_custom_call.1} parent=1 // pred_region
      %s55 = ssub.s32 128, 128
      %56 = vsyncadd [#allocation4], %s55
      %s58 = sshll.u32 [#allocation5], 4
      %s59 = int_to_ptr.vmem [resolvable:$true] %s58
      %61 = dma.vmem_to_hbm [thread:$0]  %s59, 128, %s1, [#allocation4]
    $region17: #{tpu_custom_call.1} parent=1 // pred_fallthru
      _
    // Predicated region
    $region18: #{tpu_custom_call.1} parent=1 // pred_check
      _
    $region19: #{tpu_custom_call.1} parent=1 // pred_check_branch
      %63 = sbr.rel (0) target = $region21
    $region20: #{tpu_custom_call.1} parent=1 // pred_region
      %s65 = ssub.s32 128, 128
      %66 = vsyncadd [#allocation7], %s65
      %s68 = sshll.u32 [#allocation6], 4
      %s69 = int_to_ptr.vmem [resolvable:$true] %s68
      %71 = dma.vmem_to_hbm [thread:$0]  %s69, 128, %s2, [#allocation7]
    $region21: #{tpu_custom_call.1} parent=1 // pred_fallthru
      _
    // Predicated region
    $region22: #{tpu_custom_call.1} parent=1 // pred_check
      _
    $region23: #{tpu_custom_call.1} parent=1 // pred_check_branch
      %73 = sbr.rel (0) target = $region25
    $region24: #{tpu_custom_call.1} parent=1 // pred_region
      %74 = dma.done [#allocation4], 128
    $region25: #{tpu_custom_call.1} parent=1 // pred_fallthru
      _
    // Predicated region
    $region26: #{tpu_custom_call.1} parent=1 // pred_check
      _
    $region27: #{tpu_custom_call.1} parent=1 // pred_check_branch
      %76 = sbr.rel (0) target = $region29
    $region28: #{tpu_custom_call.1} parent=1 // pred_region
      %77 = dma.done [#allocation7], 128
    $region29: #{tpu_custom_call.1} parent=1 // pred_fallthru
      _
    %78 = vsyncpa [#allocation3], 1
    %79 = vsyncpa [#allocation4], 1
    %80 = vsyncpa [#allocation7], 1

</llo_original>
